<compile_context>
chip_gen: v7x
topology: tpu7x:2x2x1
jax: 0.10.0
libtpu: 0.0.40
codegen_flags: <defaults>
</compile_context>

<pallas_src>
import functools

import jax
import jax.numpy as jnp
from jax.experimental import pallas as pl
from jax.experimental.pallas import tpu as pltpu

_LANE = 128
_WIDTHS = (2048, 1024, 512, 256, _LANE)
_SPLIT_THRESHOLD_BYTES = 512 * 1024  # only force multi-block above this size


def _tpu_tuning():
    """Per-generation (block_bytes, min_grid_blocks, generation_tag)."""
    kind = ""
    try:
        kind = jax.devices()[0].device_kind.lower()
    except Exception:
        pass
    if "v7" in kind or "tpu7" in kind or "7x" in kind:
        # 64 MiB VMEM, 2 TCs: 4 MiB blocks (16 MiB dbl-buffered) + >=4 grid steps.
        return 4 * 1024 * 1024, 4, "v7x"
    if "v6" in kind:
        # 32 MiB default scoped VMEM: 4 MiB blocks fit with headroom.
        return 4 * 1024 * 1024, 1, "v6e"
    if "v5e" in kind or "v5 lite" in kind or "v5lite" in kind:
        # 16 MiB default scoped VMEM: keep 2 MiB blocks.
        return 2 * 1024 * 1024, 1, "v5e"
    # Unknown / older generations: conservative default (same as v5e).
    return 2 * 1024 * 1024, 1, "other"


def _smish_kernel(x_ref, o_ref, *, alpha: float, beta: float, compute_dtype):
    x = x_ref[...].astype(compute_dtype)
    # sigmoid(b*x) = 0.5 + 0.5*tanh(0.5*b*x): tanh lands on the EUP slot.
    s = 0.5 + 0.5 * jnp.tanh((0.5 * beta) * x)
    # tanh(log(1 + s)) == t / (t + 2) with t = s^2 + 2s (exact identity).
    t = s * (s + 2.0)
    denom = t + 2.0
    if denom.dtype == jnp.float32:
        inv = pl.reciprocal(denom, approx=True)  # EUP vrcp; frees the VALU divide
    else:
        inv = pl.reciprocal(denom.astype(jnp.float32), approx=True).astype(compute_dtype)
    xa = x if alpha == 1.0 else alpha * x
    o_ref[...] = (xa * (t * inv)).astype(o_ref.dtype)


def _smish_exact_jnp(x, alpha: float, beta: float):
    """Exact reference / tiny-tail path (plain jnp)."""
    xf = x.astype(jnp.float32)
    y = alpha * xf * jnp.tanh(jnp.log1p(jax.nn.sigmoid(beta * xf)))
    return y.astype(x.dtype)


def smish(x: jax.Array, alpha: float = 1.0, beta: float = 1.0, *, in_place: bool = False) -> jax.Array:
    # Match PyTorch module semantics: non-positive values fall back to 1.
    alpha = float(alpha) if alpha > 0 else 1.0
    beta = float(beta) if beta > 0 else 1.0

    orig_shape = x.shape
    orig_dtype = x.dtype
    n = x.size
    if n == 0:
        return x

    flat = x.reshape(-1)

    # Pick the widest lane-dense width that divides numel (zero-copy reshape).
    width = None
    for w in _WIDTHS:
        if n % w == 0:
            width = w
            break

    tail = None
    if width is None:
        # Ragged numel: kernel on the largest multiple-of-128 prefix, jnp tail.
        n_main = (n // _LANE) * _LANE
        if n_main == 0:
            return _smish_exact_jnp(flat, alpha, beta).reshape(orig_shape)
        for w in _WIDTHS:
            if n_main % w == 0:
                width = w
                break
        main = flat[:n_main]
        tail = flat[n_main:]
    else:
        n_main = n
        main = flat

    rows = n_main // width
    x2d = main.reshape(rows, width)

    itemsize = jnp.dtype(orig_dtype).itemsize
    sub = max(8, 32 // itemsize)  # sublane granule: 8 (f32), 16 (bf16), 32 (int8)
    block_bytes, min_blocks, gen = _tpu_tuning()

    # bf16 math only where the VPU/EUP support it (v6e/v7x); else compute in f32.
    if orig_dtype == jnp.bfloat16 and gen in ("v6e", "v7x"):
        compute_dtype = jnp.bfloat16
    else:
        compute_dtype = jnp.float32

    # Block rows targeting block_bytes per block, multiple of the sublane granule.
    target_rows = max(sub, (block_bytes // (width * itemsize)) // sub * sub)
    block_rows = min(rows, target_rows)

    # v7x: guarantee >= min_blocks grid steps so both TensorCores get work.
    if min_blocks > 1 and rows * width * itemsize > _SPLIT_THRESHOLD_BYTES:
        cap = max(sub, (pl.cdiv(rows, min_blocks) // sub) * sub)
        block_rows = min(block_rows, cap)

    if block_rows < rows:
        block_rows = max(sub, (block_rows // sub) * sub)

    grid = (pl.cdiv(rows, block_rows),)

    kernel = functools.partial(
        _smish_kernel, alpha=alpha, beta=beta, compute_dtype=compute_dtype
    )

    call_kwargs = dict(
        out_shape=jax.ShapeDtypeStruct((rows, width), orig_dtype),
        grid=grid,
        in_specs=[pl.BlockSpec((block_rows, width), lambda i: (i, 0))],
        out_specs=pl.BlockSpec((block_rows, width), lambda i: (i, 0)),
        compiler_params=pltpu.CompilerParams(
            dimension_semantics=("parallel",),
        ),
    )
    if in_place:
        # Only a win when the caller donates the input at a jit boundary.
        call_kwargs["input_output_aliases"] = {0: 0}

    out2d = pl.pallas_call(kernel, **call_kwargs)(x2d)

    out_flat = out2d.reshape(-1)
    if tail is not None:
        out_flat = jnp.concatenate([out_flat, _smish_exact_jnp(tail, alpha, beta)])
    return out_flat.reshape(orig_shape)


def _smish_ref(x, alpha=1.0, beta=1.0):
    xf = x.astype(jnp.float32)
    y = alpha * xf * jnp.tanh(jnp.log(1.0 + jax.nn.sigmoid(beta * xf)))
    return y.astype(x.dtype)


if __name__ == "__main__":
    key = jax.random.PRNGKey(0)
    # approx reciprocal + EUP tanh introduce ~1e-4..1e-3 relative error.
    tol = dict(atol=5e-3, rtol=5e-3)

    # Case 1: typical NCHW activation shape (numel divisible by 128 -> no copies).
    x1 = jax.random.normal(key, (2, 4, 16, 16), dtype=jnp.float32)
    ref1 = _smish_ref(x1)
    out1 = jax.block_until_ready(smish(x1, alpha=1.0, beta=1.0))
    assert out1.shape == x1.shape and out1.dtype == x1.dtype
    assert jnp.allclose(out1, ref1, **tol)

    # Case 2: awkward shape exercising the prefix + jnp-tail fallback path.
    x2 = 3.0 * jax.random.normal(jax.random.PRNGKey(1), (2, 7, 9, 5), dtype=jnp.float32)
    ref2 = _smish_ref(x2)
    out2 = jax.block_until_ready(smish(x2, alpha=1.0, beta=1.0))
    assert out2.shape == x2.shape and out2.dtype == x2.dtype
    assert jnp.allclose(out2, ref2, **tol)

    # Case 3: larger tensor exercising the multi-block pipelined grid.
    x3 = jax.random.normal(jax.random.PRNGKey(2), (32, 8, 64, 64), dtype=jnp.float32)
    ref3 = _smish_ref(x3)
    out3 = jax.block_until_ready(smish(x3, alpha=1.0, beta=1.0))
    assert out3.shape == x3.shape and out3.dtype == x3.dtype
    assert jnp.allclose(out3, ref3, **tol)

    print("KERNEL_OK")
</pallas_src>

<mosaic_0001>
module attributes {stable_mosaic.version = 11 : i64} {
  func.func @_smish_kernel(%arg0: i32, %arg1: memref<1x2048xf32, #tpu.memory_space<vmem>>, %arg2: memref<1x2048xf32, #tpu.memory_space<vmem>>) attributes {dimension_semantics = [#tpu.dimension_semantics<parallel>], iteration_bounds = array<i64: 1>, scalar_prefetch = 0 : i64, scratch_operands = 0 : i64, tpu.core_type = #tpu.core_type<tc>, window_params = [{transform_indices = @transform_0, window_bounds = array<i64: 1, 2048>}, {transform_indices = @transform_1, window_bounds = array<i64: 1, 2048>}]} {
    %c0 = arith.constant 0 : index
    %c0_0 = arith.constant 0 : index
    %0 = vector.load %arg1[%c0, %c0_0] : memref<1x2048xf32, #tpu.memory_space<vmem>>, vector<1x2048xf32>
    %cst = arith.constant 5.000000e-01 : f32
    %1 = vector.broadcast %cst : f32 to vector<1x2048xf32>
    %2 = arith.mulf %1, %0 : vector<1x2048xf32>
    %3 = math.tanh %2 : vector<1x2048xf32>
    %cst_1 = arith.constant 5.000000e-01 : f32
    %4 = vector.broadcast %cst_1 : f32 to vector<1x2048xf32>
    %5 = arith.mulf %4, %3 : vector<1x2048xf32>
    %cst_2 = arith.constant 5.000000e-01 : f32
    %6 = vector.broadcast %cst_2 : f32 to vector<1x2048xf32>
    %7 = arith.addf %6, %5 : vector<1x2048xf32>
    %cst_3 = arith.constant 2.000000e+00 : f32
    %8 = vector.broadcast %cst_3 : f32 to vector<1x2048xf32>
    %9 = arith.addf %7, %8 : vector<1x2048xf32>
    %10 = arith.mulf %7, %9 : vector<1x2048xf32>
    %cst_4 = arith.constant 2.000000e+00 : f32
    %11 = vector.broadcast %cst_4 : f32 to vector<1x2048xf32>
    %12 = arith.addf %10, %11 : vector<1x2048xf32>
    %13 = tpu.reciprocal %12 {approx = true} : vector<1x2048xf32> -> vector<1x2048xf32>
    %14 = arith.mulf %10, %13 : vector<1x2048xf32>
    %15 = arith.mulf %0, %14 : vector<1x2048xf32>
    %c0_5 = arith.constant 0 : index
    %c0_6 = arith.constant 0 : index
    %16 = vector.load %arg2[%c0_5, %c0_6] : memref<1x2048xf32, #tpu.memory_space<vmem>>, vector<1x2048xf32>
    tpu.vector_store %arg2[%c0_5, %c0_6], %15 {strides = array<i32>} : memref<1x2048xf32, #tpu.memory_space<vmem>>, vector<1x2048xf32>,
    return
  }
  func.func @transform_0(%arg0: i32) -> (i32, i32) {
    %c0_i32 = arith.constant 0 : i32
    %c0_i32_0 = arith.constant 0 : i32
    return %arg0, %c0_i32 : i32, i32
  }
  func.func @transform_1(%arg0: i32) -> (i32, i32) {
    %c0_i32 = arith.constant 0 : i32
    %c0_i32_0 = arith.constant 0 : i32
    return %arg0, %c0_i32 : i32, i32
  }
}

</mosaic_0001>

<llo_original>
// kernel: tpu_custom_call.1
$region0: #{tpu_custom_call.1}
  #allocation0 [shape = 'u32[]', space=smem, size = 0x4, offset = 0x4, fixed_abs, tag = 'smem constant byte address 0x4 - core index']
  #allocation1 [shape = 'u32[144,128]{1,0:T(1,128)}', space=vmem, size = 0x12000, scoped, tag = 'internal scratch']
  %s0 = inlined_call_operand.hbm [shape: f32[1,2048], index: 0, kind: input, shape index: {}]
  %s1 = inlined_call_operand.hbm [shape: f32[1,2048], index: 1, kind: output, shape index: {}]
  %s2 = sld [smem:[#allocation0]]
  $region18: #{tpu_custom_call.1} parent=0
    _
  %s4 = ssub.s32 1, %s2
  %s5 = scalar_select 0, %s4, %s2
  $region1: #{tpu_custom_call.1} parent=0
    #allocation2 [shape = 'u8[8192]{0}', space=vmem, size = 0x2000, scoped, tag = 'input window, operand 0, single buffered']
    #allocation3 [shape = 's32[1]{0}', space=sflag, size = 0x4, scoped, tag = 'scoped memory for tpu_custom_call.1']
    #allocation4 [shape = 's32[1]{0}', space=sflag, size = 0x4, scoped, tag = 'scoped memory for tpu_custom_call.1']
    #allocation5 [shape = 'u8[8192]{0}', space=vmem, size = 0x2000, scoped, tag = 'output window, operand 0, single buffered']
    %6 = vsyncpa [#allocation3], 0
    %7 = vsyncpa [#allocation4], 0
    // Predicated region
    $region2: #{tpu_custom_call.1} parent=1 // pred_check
      _
    $region3: #{tpu_custom_call.1} parent=1 // pred_check_branch
      %9 = sbr.rel (0) target = $region5
    $region4: #{tpu_custom_call.1} parent=1 // pred_region
      %s11 = ssub.s32 256, 256
      %12 = vsyncadd [#allocation3], %s11
      %s14 = sshll.u32 [#allocation2], 4
      %s15 = int_to_ptr.vmem [resolvable:$true] %s14
      %17 = dma.hbm_to_vmem [thread:$0]  %s0, 256, %s15, [#allocation3]
    $region5: #{tpu_custom_call.1} parent=1 // pred_fallthru
      _
    // Predicated region
    $region6: #{tpu_custom_call.1} parent=1 // pred_check
      _
    $region7: #{tpu_custom_call.1} parent=1 // pred_check_branch
      %19 = sbr.rel (0) target = $region9
    $region8: #{tpu_custom_call.1} parent=1 // pred_region
      %20 = dma.done [#allocation3], 256
    $region9: #{tpu_custom_call.1} parent=1 // pred_fallthru
      _
    %v21 = vld [vmem:[#allocation2] sm:$0xff]
    %v22 = vld [vmem:[#allocation2 + $0x8] sm:$0xff]
    %v23 = vmul.f32 %v21, 0.5
    %v24 = vmul.f32 %v22, 0.5
    %v25 = vtanh.pop %v23
    %v26 = vtanh.pop %v24
    %v27 = vmul.f32 %v25, 0.5
    %v28 = vmul.f32 %v26, 0.5
    %v29 = vadd.f32 %v27, 0.5
    %v30 = vadd.f32 %v28, 0.5
    %v31 = vadd.f32 %v29, 2.0
    %v32 = vadd.f32 %v30, 2.0
    %v33 = vmul.f32 %v29, %v31
    %v34 = vmul.f32 %v30, %v32
    %v35 = vadd.f32 %v33, 2.0
    %v36 = vadd.f32 %v34, 2.0
    %v37 = vrcp.pop %v35
    %v38 = vrcp.pop %v36
    %v39 = vmul.f32 %v33, %v37
    %v40 = vmul.f32 %v34, %v38
    %v41 = vmul.f32 %v21, %v39
    %v42 = vmul.f32 %v22, %v40
    %43 = vst [vmem:[#allocation5] sm:$0xff] %v41
    %44 = vst [vmem:[#allocation5 + $0x8] sm:$0xff] %v42
    // Predicated region
    $region10: #{tpu_custom_call.1} parent=1 // pred_check
      _
    $region11: #{tpu_custom_call.1} parent=1 // pred_check_branch
      %46 = sbr.rel (0) target = $region13
    $region12: #{tpu_custom_call.1} parent=1 // pred_region
      %s48 = ssub.s32 256, 256
      %49 = vsyncadd [#allocation4], %s48
      %s51 = sshll.u32 [#allocation5], 4
      %s52 = int_to_ptr.vmem [resolvable:$true] %s51
      %54 = dma.vmem_to_hbm [thread:$0]  %s52, 256, %s1, [#allocation4]
    $region13: #{tpu_custom_call.1} parent=1 // pred_fallthru
      _
    // Predicated region
    $region14: #{tpu_custom_call.1} parent=1 // pred_check
      _
    $region15: #{tpu_custom_call.1} parent=1 // pred_check_branch
      %56 = sbr.rel (0) target = $region17
    $region16: #{tpu_custom_call.1} parent=1 // pred_region
      %57 = dma.done [#allocation4], 256
    $region17: #{tpu_custom_call.1} parent=1 // pred_fallthru
      _
    %58 = vsyncpa [#allocation3], 1
    %59 = vsyncpa [#allocation4], 1

</llo_original>
